<compile_context>
chip_gen: v6e
topology: v6e:2x2x1
jax: 0.10.0
libtpu: 0.0.40
codegen_flags: <defaults>
</compile_context>

<pallas_src>
import jax
import jax.numpy as jnp
from jax.experimental import pallas as pl
from jax.experimental.pallas import tpu as pltpu

# ---------------- config (small, consistent with the module) ----------------
PATCH = 4                 # patch_size
TEMPORAL_PATCH = 2        # temporal_patch_size (unused in forward)
CHANNEL = 4               # channel / in_channels
HIDDEN = 32               # hidden_size
MERGE = 2                 # merge_size (unused in forward)
MAX_POS = 512             # max_position_embeddings
BATCH = 2
GRID_H, GRID_W = 4, 2     # image_grid_hw[0] -> seq = 8
CPP = CHANNEL * PATCH * PATCH   # flattened patch length = 64


# --------------------------------- kernel ------------------------------------
def visual_feature_kernel(x_ref, wc_ref, bc_ref, wl_ref, bl_ref, o_ref):
    """x_ref: (B*S, C*P*P).  Conv2d with kernel==stride==P over a PxP patch is
    a single matmul against the flattened conv kernel; then ReLU; then the
    hidden->hidden Linear.  Everything fused in one invocation."""
    h = jnp.dot(x_ref[...], wc_ref[...], preferred_element_type=jnp.float32)
    h = h + bc_ref[...]                         # conv bias, (1, H) broadcast
    h = jnp.maximum(h, 0.0)                     # nn.ReLU
    o = jnp.dot(h, wl_ref[...], preferred_element_type=jnp.float32)
    o = o + bl_ref[...]                         # linear bias
    o_ref[...] = o.astype(o_ref.dtype)


# --------------------------------- wrapper -----------------------------------
def simple_visual_feature(hidden_states, image_grid_hw, params):
    """Pallas port of SimpleVisualFeature.forward.

    hidden_states: (bs, gh*gw, C*P*P) or (N, C*P*P) float32
    image_grid_hw: (bs, 2) int32 — only row 0 is used (as in the reference).
    Shapes must be static for Pallas, so grid_h/grid_w are read host-side.
    """
    bs = image_grid_hw.shape[0]
    grid_h = int(image_grid_hw[0, 0])
    grid_w = int(image_grid_hw[0, 1])
    seq = grid_h * grid_w

    # .view(-1, C*P*P)  (identity if already 2-D)
    x = hidden_states.reshape(-1, CPP)
    # seq truncation: reference slices after the conv, but the conv acts on
    # each patch independently, so dropping the extra patches first is
    # equivalent (and here seq <= MAX_POS so it is a no-op anyway).
    x = x.reshape(bs, seq, CPP)[:, :MAX_POS, :]
    seq_t = x.shape[1]
    x = x.reshape(bs * seq_t, CPP)              # fuse batch + seq: one matmul slab

    vmem = pl.BlockSpec(memory_space=pltpu.MemorySpace.VMEM)
    out = pl.pallas_call(
        visual_feature_kernel,
        out_shape=jax.ShapeDtypeStruct((bs * seq_t, HIDDEN), jnp.float32),
        in_specs=[vmem] * 5,
        out_specs=vmem,
    )(x, params["wc"], params["bc"], params["wl"], params["bl"])
    return out.reshape(bs, seq_t, HIDDEN)


# ---------------------------- pure-JAX reference ------------------------------
def reference(hidden_states, image_grid_hw, conv_w, conv_b, lin_w, lin_b):
    bs = image_grid_hw.shape[0]
    grid_h = int(image_grid_hw[0, 0])
    grid_w = int(image_grid_hw[0, 1])
    x = hidden_states.reshape(-1, CPP).reshape(-1, CHANNEL, PATCH, PATCH)
    y = jax.lax.conv_general_dilated(
        x, conv_w, window_strides=(PATCH, PATCH), padding="VALID",
        dimension_numbers=("NCHW", "OIHW", "NCHW"))
    y = y + conv_b[None, :, None, None]                       # (N, H, 1, 1)
    y = y.reshape(bs, grid_h * grid_w, HIDDEN)
    y = y[:, :MAX_POS, :]
    y = jnp.maximum(y, 0.0)
    y = y @ lin_w.T + lin_b                                    # torch Linear
    return y


# ----------------------------------- main -------------------------------------
if __name__ == "__main__":
    key = jax.random.PRNGKey(0)
    k_conv_w, k_conv_b, k_lin_w, k_lin_b, k_x = jax.random.split(key, 5)

    # PyTorch-layout parameters (deterministic synthetic weights)
    conv_w = 0.05 * jax.random.normal(k_conv_w, (HIDDEN, CHANNEL, PATCH, PATCH),
                                      jnp.float32)             # Conv2d weight (O,I,kh,kw)
    conv_b = 0.02 * jax.random.normal(k_conv_b, (HIDDEN,), jnp.float32)
    lin_w = 0.05 * jax.random.normal(k_lin_w, (HIDDEN, HIDDEN), jnp.float32)  # (out,in)
    lin_b = 0.02 * jax.random.normal(k_lin_b, (HIDDEN,), jnp.float32)

    # Kernel-friendly packing: conv as (C*P*P, H) matmul weight, biases as (1,H)
    params = {
        "wc": conv_w.reshape(HIDDEN, CPP).T,     # (CPP, H)
        "bc": conv_b.reshape(1, HIDDEN),
        "wl": lin_w.T,                           # (H, H), x @ W.T + b
        "bl": lin_b.reshape(1, HIDDEN),
    }

    # inputs: (bs, grid_h*grid_w, C*P*P) flattened-patch pixel values
    hidden_states = jax.random.normal(
        k_x, (BATCH, GRID_H * GRID_W, CPP), jnp.float32)
    image_grid_hw = jnp.array([[GRID_H, GRID_W]] * BATCH, dtype=jnp.int32)

    out = jax.block_until_ready(
        simple_visual_feature(hidden_states, image_grid_hw, params))
    ref = reference(hidden_states, image_grid_hw, conv_w, conv_b, lin_w, lin_b)

    assert out.shape == (BATCH, GRID_H * GRID_W, HIDDEN)
    ok = bool(jnp.all(jnp.isfinite(out))) and bool(
        jnp.allclose(out, ref, atol=1e-4, rtol=1e-4))
    if ok:
        print("KERNEL_OK")
    else:
        print("MISMATCH max_abs_err=", float(jnp.max(jnp.abs(out - ref))))
</pallas_src>

<mosaic_0001>
module attributes {stable_mosaic.version = 11 : i64} {
  func.func @visual_feature_kernel(%arg0: memref<16x64xf32, #tpu.memory_space<vmem>>, %arg1: memref<64x32xf32, #tpu.memory_space<vmem>>, %arg2: memref<1x32xf32, #tpu.memory_space<vmem>>, %arg3: memref<32x32xf32, #tpu.memory_space<vmem>>, %arg4: memref<1x32xf32, #tpu.memory_space<vmem>>, %arg5: memref<16x32xf32, #tpu.memory_space<vmem>>) attributes {dimension_semantics = [], scalar_prefetch = 0 : i64, scratch_operands = 0 : i64, tpu.core_type = #tpu.core_type<tc>} {
    %c0 = arith.constant 0 : index
    %c0_0 = arith.constant 0 : index
    %0 = vector.load %arg0[%c0, %c0_0] : memref<16x64xf32, #tpu.memory_space<vmem>>, vector<16x64xf32>
    %c0_1 = arith.constant 0 : index
    %c0_2 = arith.constant 0 : index
    %1 = vector.load %arg1[%c0_1, %c0_2] : memref<64x32xf32, #tpu.memory_space<vmem>>, vector<64x32xf32>
    %cst = arith.constant dense<0.000000e+00> : vector<16x32xf32>
    %2 = tpu.matmul %0, %1, %cst {dimension_numbers = #tpu.dot_dimension_numbers<[1], [0], [0], [1], [0, 0, 1, 1], [], []>} : vector<16x64xf32>, vector<64x32xf32>, vector<16x32xf32> -> vector<16x32xf32>
    %c0_3 = arith.constant 0 : index
    %c0_4 = arith.constant 0 : index
    %3 = vector.load %arg2[%c0_3, %c0_4] : memref<1x32xf32, #tpu.memory_space<vmem>>, vector<1x32xf32>
    %4 = vector.broadcast %3 : vector<1x32xf32> to vector<16x32xf32>
    %5 = arith.addf %2, %4 : vector<16x32xf32>
    %cst_5 = arith.constant 0.000000e+00 : f32
    %6 = vector.broadcast %cst_5 : f32 to vector<16x32xf32>
    %7 = arith.maximumf %5, %6 : vector<16x32xf32>
    %c0_6 = arith.constant 0 : index
    %c0_7 = arith.constant 0 : index
    %8 = vector.load %arg3[%c0_6, %c0_7] : memref<32x32xf32, #tpu.memory_space<vmem>>, vector<32x32xf32>
    %cst_8 = arith.constant dense<0.000000e+00> : vector<16x32xf32>
    %9 = tpu.matmul %7, %8, %cst_8 {dimension_numbers = #tpu.dot_dimension_numbers<[1], [0], [0], [1], [0, 0, 1, 1], [], []>} : vector<16x32xf32>, vector<32x32xf32>, vector<16x32xf32> -> vector<16x32xf32>
    %c0_9 = arith.constant 0 : index
    %c0_10 = arith.constant 0 : index
    %10 = vector.load %arg4[%c0_9, %c0_10] : memref<1x32xf32, #tpu.memory_space<vmem>>, vector<1x32xf32>
    %11 = vector.broadcast %10 : vector<1x32xf32> to vector<16x32xf32>
    %12 = arith.addf %9, %11 : vector<16x32xf32>
    %c0_11 = arith.constant 0 : index
    %c0_12 = arith.constant 0 : index
    %13 = vector.load %arg5[%c0_11, %c0_12] : memref<16x32xf32, #tpu.memory_space<vmem>>, vector<16x32xf32>
    tpu.vector_store %arg5[%c0_11, %c0_12], %12 {strides = array<i32>} : memref<16x32xf32, #tpu.memory_space<vmem>>, vector<16x32xf32>,
    return
  }
}

</mosaic_0001>

<llo_original>
// kernel: tpu_custom_call.1
$region0: #{tpu_custom_call.1}
  #allocation0 [shape = 'u32[]', space=smem, size = 0x4, offset = 0x4, fixed_abs, tag = 'smem constant byte address 0x4 - core index']
  #allocation1 [shape = 'u32[144,128]{1,0:T(1,128)}', space=vmem, size = 0x12000, scoped, tag = 'internal scratch']
  %s0 = inlined_call_operand.vmem [shape: f32[16,64], index: 0, kind: input, shape index: {}]
  %s1 = inlined_call_operand.vmem [shape: f32[64,32], index: 1, kind: input, shape index: {}]
  %s2 = inlined_call_operand.vmem [shape: f32[1,32], index: 2, kind: input, shape index: {}]
  %s3 = inlined_call_operand.vmem [shape: f32[32,32], index: 3, kind: input, shape index: {}]
  %s4 = inlined_call_operand.vmem [shape: f32[1,32], index: 4, kind: input, shape index: {}]
  %s5 = inlined_call_operand.hbm [shape: f32[16,32], index: 5, kind: output, shape index: {}]
  %s6 = sld [smem:[#allocation0]]
  $region30: #{tpu_custom_call.1} parent=0
    _
  %s8 = ssub.s32 1, %s6
  %s9 = scalar_select 0, %s8, %s6
  $region1: #{tpu_custom_call.1} parent=0
    #allocation2 [shape = 'u8[8192]{0}', space=vmem, size = 0x2000, scoped, tag = 'output window, operand 0, single buffered']
    #allocation3 [shape = 's32[1]{0}', space=sflag, size = 0x4, scoped, tag = 'scoped memory for tpu_custom_call.1']
    %10 = vsyncpa [#allocation3], 0
    // Predicated region
    $region2: #{tpu_custom_call.1} parent=1 // pred_check
      _
    $region3: #{tpu_custom_call.1} parent=1 // pred_check_branch
      %12 = sbr.rel (0) target = $region5
    $region4: #{tpu_custom_call.1} parent=1 // pred_region
      _
    $region5: #{tpu_custom_call.1} parent=1 // pred_fallthru
      _
    // Predicated region
    $region6: #{tpu_custom_call.1} parent=1 // pred_check
      _
    $region7: #{tpu_custom_call.1} parent=1 // pred_check_branch
      %14 = sbr.rel (0) target = $region9
    $region8: #{tpu_custom_call.1} parent=1 // pred_region
      _
    $region9: #{tpu_custom_call.1} parent=1 // pred_fallthru
      _
    // Predicated region
    $region10: #{tpu_custom_call.1} parent=1 // pred_check
      _
    $region11: #{tpu_custom_call.1} parent=1 // pred_check_branch
      %16 = sbr.rel (0) target = $region13
    $region12: #{tpu_custom_call.1} parent=1 // pred_region
      _
    $region13: #{tpu_custom_call.1} parent=1 // pred_fallthru
      _
    // Predicated region
    $region14: #{tpu_custom_call.1} parent=1 // pred_check
      _
    $region15: #{tpu_custom_call.1} parent=1 // pred_check_branch
      %18 = sbr.rel (0) target = $region17
    $region16: #{tpu_custom_call.1} parent=1 // pred_region
      _
    $region17: #{tpu_custom_call.1} parent=1 // pred_fallthru
      _
    // Predicated region
    $region18: #{tpu_custom_call.1} parent=1 // pred_check
      _
    $region19: #{tpu_custom_call.1} parent=1 // pred_check_branch
      %20 = sbr.rel (0) target = $region21
    $region20: #{tpu_custom_call.1} parent=1 // pred_region
      _
    $region21: #{tpu_custom_call.1} parent=1 // pred_fallthru
      _
    %v21 = vld [vmem:[%s0] sm:$0xff]
    %v22 = vld [vmem:[%s0 + $0x8] sm:$0xff]
    %v23 = vld [vmem:[%s1] sm:$0xff]
    %v24 = vld [vmem:[%s1 + $0x8] sm:$0xff]
    %v25 = vld [vmem:[%s1 + $0x10] sm:$0xff]
    %v26 = vld [vmem:[%s1 + $0x18] sm:$0xff]
    %v27 = vld [vmem:[%s1 + $0x20] sm:$0xff]
    %v28 = vld [vmem:[%s1 + $0x28] sm:$0xff]
    %v29 = vld [vmem:[%s1 + $0x30] sm:$0xff]
    %v30 = vld [vmem:[%s1 + $0x38] sm:$0xff]
    %v31 = vld [vmem:[%s2] sm:$0x1]
    %v33 = vlaneseq
    %v34 = vshrl.u32 %v33, 7
    %v35 = vsub.s32 0, %v34
    %v36 = vrot.slane %v31, %v35
    %vm38 = vcmask 523264
    %v40 = vsel %vm38, %v21, 0
    %v43 = vsel %vm38, %v22, 0
    %45 = vmatprep.subr.mxu0 0.0
    %46 = vmatpush1.msra.mxu0 0.0
    %47 = vmatprep.subr.mxu0 0.0
    %48 = vmatpush1.msra.mxu0 0.0
    %49 = vmatprep.subr.mxu0 0.0
    %50 = vmatpush1.msra.mxu0 0.0
    %51 = vmatprep.subr.mxu0 0.0
    %52 = vmatpush1.msra.mxu0 0.0
    %53 = vmatprep.subr.mxu0 0.0
    %54 = vmatpush1.msra.mxu0 0.0
    %55 = vmatprep.subr.mxu0 0.0
    %56 = vmatpush1.msra.mxu0 0.0
    %57 = vmatprep.subr.mxu0 0.0
    %58 = vmatpush1.msra.mxu0 0.0
    %59 = vmatprep.subr.mxu0 0.0
    %60 = vmatpush1.msra.mxu0 0.0
    %61 = vmatprep.subr.mxu0 0.0
    %62 = vmatpush1.msra.mxu0 %v30
    %63 = vmatprep.subr.mxu0 0.0
    %64 = vmatpush1.msra.mxu0 %v29
    %65 = vmatprep.subr.mxu0 0.0
    %66 = vmatpush1.msra.mxu0 %v28
    %67 = vmatprep.subr.mxu0 0.0
    %68 = vmatpush1.msra.mxu0 %v27
    %69 = vmatprep.subr.mxu0 0.0
    %70 = vmatpush1.msra.mxu0 %v26
    %71 = vmatprep.subr.mxu0 0.0
    %72 = vmatpush1.msra.mxu0 %v25
    %73 = vmatprep.subr.mxu0 0.0
    %74 = vmatpush1.msra.mxu0 %v24
    %75 = vmatprep.subr.mxu0 0.0
    %76 = vmatpush1.msra.mxu0 %v23
    %77 = vmatprep.subr.mxu0 0.0
    %78 = vmatpush2.msra.mxu0 0.0
    %79 = vmatprep.subr.mxu0 0.0
    %80 = vmatpush2.msra.mxu0 0.0
    %81 = vmatprep.subr.mxu0 0.0
    %82 = vmatpush2.msra.mxu0 0.0
    %83 = vmatprep.subr.mxu0 0.0
    %84 = vmatpush2.msra.mxu0 0.0
    %85 = vmatprep.subr.mxu0 0.0
    %86 = vmatpush2.msra.mxu0 0.0
    %87 = vmatprep.subr.mxu0 0.0
    %88 = vmatpush2.msra.mxu0 0.0
    %89 = vmatprep.subr.mxu0 0.0
    %90 = vmatpush2.msra.mxu0 0.0
    %91 = vmatprep.subr.mxu0 0.0
    %92 = vmatpush2.msra.mxu0 0.0
    %93 = vmatprep.subr.mxu0 0.0
    %94 = vmatpush2.msra.mxu0 0.0
    %95 = vmatprep.subr.mxu0 0.0
    %96 = vmatpush2.msra.mxu0 0.0
    %97 = vmatprep.subr.mxu0 0.0
    %98 = vmatpush2.msra.mxu0 0.0
    %99 = vmatprep.subr.mxu0 0.0
    %100 = vmatpush2.msra.mxu0 0.0
    %101 = vmatprep.subr.mxu0 0.0
    %102 = vmatpush2.msra.mxu0 0.0
    %103 = vmatprep.subr.mxu0 0.0
    %104 = vmatpush2.msra.mxu0 0.0
    %105 = vmatprep.subr.mxu0 0.0
    %106 = vmatpush2.msra.mxu0 0.0
    %107 = vmatprep.subr.mxu0 0.0
    %108 = vmatpush2.msra.mxu0 0.0
    %109 = vmatprep.mubr.f32.mxu0 0.0
    %110 = vmatmul.mubr.f32.gmra.mxu0 %v40
    %v111 = vpop.f32.mrf.mxu0
    %v112 = vadd.f32 %v36, %v111
    %v113 = vpop.f32.mrf.mxu0
    %114 = vmatprep.mubr.f32.mxu0 0.0
    %115 = vmatmul.mubr.f32.gmra.mxu0 %v43
    %v116 = vpop.f32.mrf.mxu0
    %v117 = vadd.f32 %v36, %v116
    %v118 = vpop.f32.mrf.mxu0
    %119 = vdwg.mxu0
    %v120 = vmax.f32 %v112, 0.0
    %v121 = vmax.f32 %v117, 0.0
    %v122 = vld [vmem:[%s3] sm:$0xff]
    %v123 = vld [vmem:[%s3 + $0x8] sm:$0xff]
    %v124 = vld [vmem:[%s3 + $0x10] sm:$0xff]
    %v125 = vld [vmem:[%s3 + $0x18] sm:$0xff]
    %v126 = vld [vmem:[%s4] sm:$0x1]
    %v128 = vlaneseq
    %v129 = vshrl.u32 %v128, 7
    %v130 = vsub.s32 0, %v129
    %v131 = vrot.slane %v126, %v130
    %vm133 = vcmask 261120
    %v135 = vsel %vm133, %v120, 0
    %v138 = vsel %vm133, %v121, 0
    %140 = vmatprep.subr.mxu0 0.0
    %141 = vmatpush1.msra.mxu0 0.0
    %142 = vmatprep.subr.mxu0 0.0
    %143 = vmatpush1.msra.mxu0 0.0
    %144 = vmatprep.subr.mxu0 0.0
    %145 = vmatpush1.msra.mxu0 0.0
    %146 = vmatprep.subr.mxu0 0.0
    %147 = vmatpush1.msra.mxu0 0.0
    %148 = vmatprep.subr.mxu0 0.0
    %149 = vmatpush1.msra.mxu0 0.0
    %150 = vmatprep.subr.mxu0 0.0
    %151 = vmatpush1.msra.mxu0 0.0
    %152 = vmatprep.subr.mxu0 0.0
    %153 = vmatpush1.msra.mxu0 0.0
    %154 = vmatprep.subr.mxu0 0.0
    %155 = vmatpush1.msra.mxu0 0.0
    %156 = vmatprep.subr.mxu0 0.0
    %157 = vmatpush1.msra.mxu0 0.0
    %158 = vmatprep.subr.mxu0 0.0
    %159 = vmatpush1.msra.mxu0 0.0
    %160 = vmatprep.subr.mxu0 0.0
    %161 = vmatpush1.msra.mxu0 0.0
    %162 = vmatprep.subr.mxu0 0.0
    %163 = vmatpush1.msra.mxu0 0.0
    %164 = vmatprep.subr.mxu0 0.0
    %165 = vmatpush1.msra.mxu0 %v125
    %166 = vmatprep.subr.mxu0 0.0
    %167 = vmatpush1.msra.mxu0 %v124
    %168 = vmatprep.subr.mxu0 0.0
    %169 = vmatpush1.msra.mxu0 %v123
    %170 = vmatprep.subr.mxu0 0.0
    %171 = vmatpush1.msra.mxu0 %v122
    %172 = vmatprep.subr.mxu0 0.0
    %173 = vmatpush2.msra.mxu0 0.0
    %174 = vmatprep.subr.mxu0 0.0
    %175 = vmatpush2.msra.mxu0 0.0
    %176 = vmatprep.subr.mxu0 0.0
    %177 = vmatpush2.msra.mxu0 0.0
    %178 = vmatprep.subr.mxu0 0.0
    %179 = vmatpush2.msra.mxu0 0.0
    %180 = vmatprep.subr.mxu0 0.0
    %181 = vmatpush2.msra.mxu0 0.0
    %182 = vmatprep.subr.mxu0 0.0
    %183 = vmatpush2.msra.mxu0 0.0
    %184 = vmatprep.subr.mxu0 0.0
    %185 = vmatpush2.msra.mxu0 0.0
    %186 = vmatprep.subr.mxu0 0.0
    %187 = vmatpush2.msra.mxu0 0.0
    %188 = vmatprep.subr.mxu0 0.0
    %189 = vmatpush2.msra.mxu0 0.0
    %190 = vmatprep.subr.mxu0 0.0
    %191 = vmatpush2.msra.mxu0 0.0
    %192 = vmatprep.subr.mxu0 0.0
    %193 = vmatpush2.msra.mxu0 0.0
    %194 = vmatprep.subr.mxu0 0.0
    %195 = vmatpush2.msra.mxu0 0.0
    %196 = vmatprep.subr.mxu0 0.0
    %197 = vmatpush2.msra.mxu0 0.0
    %198 = vmatprep.subr.mxu0 0.0
    %199 = vmatpush2.msra.mxu0 0.0
    %200 = vmatprep.subr.mxu0 0.0
    %201 = vmatpush2.msra.mxu0 0.0
    %202 = vmatprep.subr.mxu0 0.0
    %203 = vmatpush2.msra.mxu0 0.0
    %204 = vmatprep.mubr.f32.mxu0 0.0
    %205 = vmatmul.mubr.f32.gmra.mxu0 %v135
    %v206 = vpop.f32.mrf.mxu0
    %v207 = vadd.f32 %v131, %v206
    %v208 = vpop.f32.mrf.mxu0
    %209 = vmatprep.mubr.f32.mxu0 0.0
    %210 = vmatmul.mubr.f32.gmra.mxu0 %v138
    %v211 = vpop.f32.mrf.mxu0
    %v212 = vadd.f32 %v131, %v211
    %v213 = vpop.f32.mrf.mxu0
    %214 = vdwg.mxu0
    %215 = vst.msk [vmem:[#allocation2] sm:$0xff] %vm133, %v207
    %216 = vst.msk [vmem:[#allocation2 + $0x8] sm:$0xff] %vm133, %v212
    // Predicated region
    $region22: #{tpu_custom_call.1} parent=1 // pred_check
      _
    $region23: #{tpu_custom_call.1} parent=1 // pred_check_branch
      %218 = sbr.rel (0) target = $region25
    $region24: #{tpu_custom_call.1} parent=1 // pred_region
      %s220 = ssub.s32 256, 256
      %221 = vsyncadd [#allocation3], %s220
      %s222 = sshll.u32 [#allocation2], 4
      %s223 = int_to_ptr.vmem [resolvable:$true] %s222
      %228 = dma.vmem_to_hbm [thread:$0]  %s223, 256, %s5, [#allocation3], 128, 128, 8
    $region25: #{tpu_custom_call.1} parent=1 // pred_fallthru
      _
    // Predicated region
    $region26: #{tpu_custom_call.1} parent=1 // pred_check
      _
    $region27: #{tpu_custom_call.1} parent=1 // pred_check_branch
      %230 = sbr.rel (0) target = $region29
    $region28: #{tpu_custom_call.1} parent=1 // pred_region
      %231 = dma.done [#allocation3], 256
    $region29: #{tpu_custom_call.1} parent=1 // pred_fallthru
      _
    %232 = vsyncpa [#allocation3], 1

</llo_original>
